<compile_context>
chip_gen: v7x
topology: tpu7x:2x2x1
jax: 0.10.0
libtpu: 0.0.40
codegen_flags: <defaults>
</compile_context>

<pallas_src>
import functools

import numpy as np
import jax
import jax.numpy as jnp
from jax import lax
from jax.experimental import pallas as pl
from jax.experimental.pallas import tpu as pltpu

BN_EPS = 1e-5


# ----------------------------- Pallas kernel ------------------------------ #
def _fused_block_kernel(x_ref, wc_ref, bc_ref, o_ref):
    # x_ref : (H*Ci,  tm)    bf16 activations, lane-dense on N*W
    # wc_ref: (H2*Co, H*Ci)  bf16 collapsed conv1*bn1 -> conv2*bn2 weights
    # bc_ref: (H2*Co, 1)     f32  collapsed bias (bn shifts pushed through)
    # o_ref : (H2*Co, tm)    bf16
    acc = jnp.dot(wc_ref[...], x_ref[...], preferred_element_type=jnp.float32)
    o_ref[...] = jnp.maximum(acc + bc_ref[...], 0.0).astype(o_ref.dtype)


def fused_temporal_block_pallas(x_r, wc, bc, *, tm):
    """x_r: (H*Ci, Mp) bf16, Mp a multiple of tm (tm a multiple of 128)."""
    r_in, m_pad = x_r.shape
    r2 = wc.shape[0]

    # Explicit VMEM budget: 2x-buffered bf16 x/out tiles + 1x-buffered weights.
    tile_bytes = 2 * tm * (r_in + r2) * 2
    weight_bytes = r2 * r_in * 2 + r2 * 4
    vmem_limit = int(min(64 << 20, max(16 << 20, 4 * (tile_bytes + weight_bytes))))

    return pl.pallas_call(
        _fused_block_kernel,
        out_shape=jax.ShapeDtypeStruct((r2, m_pad), jnp.bfloat16),
        grid_spec=pltpu.PrefetchScalarGridSpec(
            num_scalar_prefetch=0,
            grid=(m_pad // tm,),
            in_specs=[
                pl.BlockSpec((r_in, tm), lambda i: (0, i)),
                # Constant-index weights/bias: single-buffer to reclaim VMEM.
                pl.BlockSpec((r2, r_in), lambda i: (0, 0),
                             pipeline_mode=pl.Buffered(1)),
                pl.BlockSpec((r2, 1), lambda i: (0, 0),
                             pipeline_mode=pl.Buffered(1)),
            ],
            out_specs=pl.BlockSpec((r2, tm), lambda i: (0, i)),
        ),
        compiler_params=pltpu.CompilerParams(
            dimension_semantics=("parallel",),
            vmem_limit_bytes=vmem_limit),
    )(x_r, wc, bc)


# --------------------------------- glue ----------------------------------- #
def _round_up(x, m):
    return ((x + m - 1) // m) * m


def _choose_tm(m):
    """Lane-tile width for the N*W axis (multiple of 128)."""
    m128 = _round_up(m, 128)
    if m128 <= 128:
        return 128                              # single tile (test size)
    if m128 <= 2048:
        return _round_up(m128 // 2, 128)        # >=2 steps -> both v7x TCs busy
    return 1024                                 # TODO(synk): sweep 1024/2048


def fake_quant_weight_int8(w):
    """Per-tensor int8 fake-quant in f32 (approximates Int8WeightPerTensorFloat)."""
    scale = jnp.maximum(jnp.max(jnp.abs(w)), 1e-12) / 127.0
    return jnp.clip(jnp.round(w / scale), -127, 127) * scale


def bn_scale_shift(bn):
    gamma, beta, mean, var = bn
    scale = gamma / jnp.sqrt(var + BN_EPS)
    shift = beta - mean * scale
    return scale, shift


def build_banded(w_scaled, h_in, h_out, stride, dilation):
    """(Co, Ci, K) -> banded matrix (h_out*Co, h_in*Ci), one vectorized einsum.

    Row h*Co+co, column (h*stride + k*dilation)*Ci + ci holds w_scaled[co,ci,k],
    so (banded @ act) with act rows ordered h_in*Ci+ci is exactly the dilated
    (K,1) conv along H.
    """
    co, ci, kk = w_scaled.shape
    src_h = (np.arange(h_out)[:, None] * stride
             + np.arange(kk)[None, :] * dilation)                     # (h_out, K)
    sel = (src_h[..., None] == np.arange(h_in)).astype(np.float32)    # (h_out,K,h_in)
    banded = jnp.einsum("hkg,ock->hogc", jnp.asarray(sel), w_scaled,
                        precision=lax.Precision.HIGHEST)
    return banded.reshape(h_out * co, h_in * ci)


def collapse_block_params(params, *, h_in, kernel_size, dilation, stride):
    """Fold int8 fake-quant + BN into banded convs and collapse them into one."""
    k = kernel_size
    h1 = (h_in - dilation * (k - 1) - 1) // stride + 1
    h2 = (h1 - dilation * (k - 1) - 1) // 1 + 1        # conv2 stride = (1, 1)

    # Quantize + fold BN scales in f32 FIRST, only then cast to bf16.
    w1 = fake_quant_weight_int8(params["w1"].astype(jnp.float32))[..., 0]  # (Co,Ci,K)
    w2 = fake_quant_weight_int8(params["w2"].astype(jnp.float32))[..., 0]  # (Co,Co,K)
    co = w1.shape[0]
    s1, sh1 = bn_scale_shift(params["bn1"])
    s2, sh2 = bn_scale_shift(params["bn2"])

    w1b = build_banded(w1 * s1[:, None, None], h_in, h1, stride, dilation)
    w2b = build_banded(w2 * s2[:, None, None], h1, h2, 1, dilation)
    b1c = jnp.tile(sh1, h1).reshape(h1 * co, 1).astype(jnp.float32)
    b2c = jnp.tile(sh2, h2).reshape(h2 * co, 1).astype(jnp.float32)

    # Affine collapse (exact: dropout1 = identity in eval, no nonlinearity
    # between conv1+bn1 and conv2).
    wc = jnp.dot(w2b, w1b, precision=lax.Precision.HIGHEST)
    bc = jnp.dot(w2b, b1c, precision=lax.Precision.HIGHEST) + b2c
    return wc.astype(jnp.bfloat16), bc.astype(jnp.float32), h2, co


@functools.partial(jax.jit, static_argnames=("kernel_size", "dilation", "stride"))
def temporal_block2d_forward(x, params, *, kernel_size, dilation, stride):
    """Inference forward of TemporalBlock2d (dropout = identity in eval)."""
    n, ci, h, w = x.shape
    wc, bc, h2, co = collapse_block_params(
        params, h_in=h, kernel_size=kernel_size, dilation=dilation, stride=stride)

    # Lane-dense activation layout: (H*Ci, N*W), lanes padded to a tile multiple.
    # For a stack of blocks this relayout is paid once per network — the
    # kernel's output layout (H2*Co, N*W) is already the next block's input.
    m = n * w
    tm = _choose_tm(m)
    m_pad = _round_up(m, tm)
    x_r = x.transpose(2, 1, 0, 3).reshape(h * ci, m)
    if m_pad != m:
        x_r = jnp.pad(x_r, ((0, 0), (0, m_pad - m)))
    x_r = x_r.astype(jnp.bfloat16)

    out = fused_temporal_block_pallas(x_r, wc, bc, tm=tm)

    # Padded lanes hold ReLU(bc) garbage — sliced off here; do not read them.
    out = out[:, :m].reshape(h2, co, n, w).transpose(2, 1, 0, 3)
    return out.astype(x.dtype)


# ------------------------ pure-JAX reference check ------------------------ #
def ref_forward(x, params, kernel_size, dilation, stride):
    def bn(y, p):
        g, b, m, v = p
        return (y - m[None, :, None, None]) / jnp.sqrt(v + BN_EPS)[None, :, None, None] \
            * g[None, :, None, None] + b[None, :, None, None]

    w1 = fake_quant_weight_int8(params["w1"])
    y = lax.conv_general_dilated(
        x, w1, window_strides=(stride, 1), padding="VALID",
        rhs_dilation=(dilation, 1),
        dimension_numbers=("NCHW", "OIHW", "NCHW"),
        precision=lax.Precision.HIGHEST)
    y = bn(y, params["bn1"])
    w2 = fake_quant_weight_int8(params["w2"])
    y = lax.conv_general_dilated(
        y, w2, window_strides=(1, 1), padding="VALID",
        rhs_dilation=(dilation, 1),
        dimension_numbers=("NCHW", "OIHW", "NCHW"),
        precision=lax.Precision.HIGHEST)
    y = bn(y, params["bn2"])
    return jnp.maximum(y, 0.0)


# --------------------------------- main ------------------------------------ #
if __name__ == "__main__":
    n_inputs, n_outputs = 4, 8
    kernel_size, dilation, stride = 3, 2, 1
    N, H, W = 2, 16, 16

    key = jax.random.PRNGKey(0)
    kx, kw1, kw2, kb1, kb2 = jax.random.split(key, 5)

    x = jax.random.normal(kx, (N, n_inputs, H, W), dtype=jnp.float32)

    def make_bn(k, c):
        kg, kb, km, kv = jax.random.split(k, 4)
        gamma = jax.random.uniform(kg, (c,), minval=0.5, maxval=1.5)
        beta = 0.1 * jax.random.normal(kb, (c,))
        mean = 0.1 * jax.random.normal(km, (c,))
        var = jax.random.uniform(kv, (c,), minval=0.5, maxval=1.5)
        return (gamma, beta, mean, var)

    params = {
        "w1": 0.2 * jax.random.normal(kw1, (n_outputs, n_inputs, kernel_size, 1)),
        "w2": 0.2 * jax.random.normal(kw2, (n_outputs, n_outputs, kernel_size, 1)),
        "bn1": make_bn(kb1, n_outputs),
        "bn2": make_bn(kb2, n_outputs),
    }

    out = jax.block_until_ready(
        temporal_block2d_forward(
            x, params,
            kernel_size=kernel_size, dilation=dilation, stride=stride))
    ref = ref_forward(x, params, kernel_size, dilation, stride)

    assert out.shape == ref.shape, (out.shape, ref.shape)
    # bf16 I/O + f32 accumulation vs f32-HIGHEST reference: 3e-2 tolerance.
    assert jnp.allclose(out, ref, atol=3e-2, rtol=3e-2), \
        float(jnp.max(jnp.abs(out - ref)))
    print("KERNEL_OK")
</pallas_src>

<mosaic_0001>
module attributes {stable_mosaic.version = 11 : i64} {
  func.func @_fused_block_kernel(%arg0: i32, %arg1: memref<64x128xbf16, #tpu.memory_space<vmem>>, %arg2: memref<64x64xbf16, #tpu.memory_space<vmem>>, %arg3: memref<64x1xf32, #tpu.memory_space<vmem>>, %arg4: memref<64x128xbf16, #tpu.memory_space<vmem>>) attributes {dimension_semantics = [#tpu.dimension_semantics<parallel>], iteration_bounds = array<i64: 1>, scalar_prefetch = 0 : i64, scratch_operands = 0 : i64, tpu.core_type = #tpu.core_type<tc>, window_params = [{transform_indices = @transform_0, window_bounds = array<i64: 64, 128>}, {pipeline_mode = #tpu.pipeline_mode<synchronous>, transform_indices = @transform_1, window_bounds = array<i64: 64, 64>}, {pipeline_mode = #tpu.pipeline_mode<synchronous>, transform_indices = @transform_2, window_bounds = array<i64: 64, 1>}, {transform_indices = @transform_3, window_bounds = array<i64: 64, 128>}]} {
    %c0 = arith.constant 0 : index
    %c0_0 = arith.constant 0 : index
    %0 = vector.load %arg2[%c0, %c0_0] : memref<64x64xbf16, #tpu.memory_space<vmem>>, vector<64x64xbf16>
    %c0_1 = arith.constant 0 : index
    %c0_2 = arith.constant 0 : index
    %1 = vector.load %arg1[%c0_1, %c0_2] : memref<64x128xbf16, #tpu.memory_space<vmem>>, vector<64x128xbf16>
    %cst = arith.constant dense<0.000000e+00> : vector<64x128xf32>
    %2 = tpu.matmul %0, %1, %cst {dimension_numbers = #tpu.dot_dimension_numbers<[1], [0], [0], [1], [0, 0, 1, 1], [], []>} : vector<64x64xbf16>, vector<64x128xbf16>, vector<64x128xf32> -> vector<64x128xf32>
    %c0_3 = arith.constant 0 : index
    %c0_4 = arith.constant 0 : index
    %3 = vector.load %arg3[%c0_3, %c0_4] : memref<64x1xf32, #tpu.memory_space<vmem>>, vector<64x1xf32>
    %4 = vector.broadcast %3 : vector<64x1xf32> to vector<64x128xf32>
    %5 = arith.addf %2, %4 : vector<64x128xf32>
    %cst_5 = arith.constant 0.000000e+00 : f32
    %6 = vector.broadcast %cst_5 : f32 to vector<64x128xf32>
    %7 = arith.maximumf %5, %6 : vector<64x128xf32>
    %8 = arith.truncf %7 : vector<64x128xf32> to vector<64x128xbf16>
    %c0_6 = arith.constant 0 : index
    %c0_7 = arith.constant 0 : index
    %9 = vector.load %arg4[%c0_6, %c0_7] : memref<64x128xbf16, #tpu.memory_space<vmem>>, vector<64x128xbf16>
    tpu.vector_store %arg4[%c0_6, %c0_7], %8 {strides = array<i32>} : memref<64x128xbf16, #tpu.memory_space<vmem>>, vector<64x128xbf16>,
    return
  }
  func.func @transform_0(%arg0: i32) -> (i32, i32) {
    %c0_i32 = arith.constant 0 : i32
    %c0_i32_0 = arith.constant 0 : i32
    return %c0_i32, %arg0 : i32, i32
  }
  func.func @transform_1(%arg0: i32) -> (i32, i32) {
    %c0_i32 = arith.constant 0 : i32
    %c0_i32_0 = arith.constant 0 : i32
    %c0_i32_1 = arith.constant 0 : i32
    return %c0_i32, %c0_i32_0 : i32, i32
  }
  func.func @transform_2(%arg0: i32) -> (i32, i32) {
    %c0_i32 = arith.constant 0 : i32
    %c0_i32_0 = arith.constant 0 : i32
    %c0_i32_1 = arith.constant 0 : i32
    return %c0_i32, %c0_i32_0 : i32, i32
  }
  func.func @transform_3(%arg0: i32) -> (i32, i32) {
    %c0_i32 = arith.constant 0 : i32
    %c0_i32_0 = arith.constant 0 : i32
    return %c0_i32, %arg0 : i32, i32
  }
}

</mosaic_0001>

<llo_original>
// kernel: temporal_block2d_forward.1
$region0: #{temporal_block2d_forward.1}
  #allocation0 [shape = 'u32[]', space=smem, size = 0x4, offset = 0x4, fixed_abs, tag = 'smem constant byte address 0x4 - core index']
  #allocation1 [shape = 'u32[144,128]{1,0:T(1,128)}', space=vmem, size = 0x12000, scoped, tag = 'internal scratch']
  %s0 = inlined_call_operand.vmem [shape: bf16[64,128], index: 0, kind: input, shape index: {}]
  %s1 = inlined_call_operand.vmem [shape: bf16[64,64], index: 1, kind: input, shape index: {}]
  %s2 = inlined_call_operand.vmem [shape: f32[64,1], index: 2, kind: input, shape index: {}]
  %s3 = inlined_call_operand.vmem [shape: bf16[64,128], index: 3, kind: output, shape index: {}]
  %s4 = sld [smem:[#allocation0]]
  $region22: #{temporal_block2d_forward.1} parent=0
    _
  %s6 = ssub.s32 1, %s4
  %s7 = scalar_select 0, %s6, %s4
  // Predicated region
  $region2: #{temporal_block2d_forward.1} parent=0 // pred_check
    _
  $region3: #{temporal_block2d_forward.1} parent=0 // pred_check_branch
    %9 = sbr.rel (0) target = $region5
  $region4: #{temporal_block2d_forward.1} parent=0 // pred_region
    _
  $region5: #{temporal_block2d_forward.1} parent=0 // pred_fallthru
    _
  // Predicated region
  $region6: #{temporal_block2d_forward.1} parent=0 // pred_check
    _
  $region7: #{temporal_block2d_forward.1} parent=0 // pred_check_branch
    %11 = sbr.rel (0) target = $region9
  $region8: #{temporal_block2d_forward.1} parent=0 // pred_region
    _
  $region9: #{temporal_block2d_forward.1} parent=0 // pred_fallthru
    _
  // Predicated region
  $region10: #{temporal_block2d_forward.1} parent=0 // pred_check
    _
  $region11: #{temporal_block2d_forward.1} parent=0 // pred_check_branch
    %13 = sbr.rel (0) target = $region13
  $region12: #{temporal_block2d_forward.1} parent=0 // pred_region
    _
  $region13: #{temporal_block2d_forward.1} parent=0 // pred_fallthru
    _
  %v15 = vld [vmem:[%s1] sm:$0xf]
  %v16 = vld [vmem:[%s1 + $0x4] sm:$0xf]
  %v17 = vld [vmem:[%s1 + $0x8] sm:$0xf]
  %v18 = vld [vmem:[%s1 + $0xc] sm:$0xf]
  %v19 = vld [vmem:[%s1 + $0x10] sm:$0xf]
  %v20 = vld [vmem:[%s1 + $0x14] sm:$0xf]
  %v21 = vld [vmem:[%s1 + $0x18] sm:$0xf]
  %v22 = vld [vmem:[%s1 + $0x1c] sm:$0xf]
  %v23 = vld [vmem:[%s0] sm:$0xf]
  %v24 = vld [vmem:[%s0 + $0x4] sm:$0xf]
  %v25 = vld [vmem:[%s0 + $0x8] sm:$0xf]
  %v26 = vld [vmem:[%s0 + $0xc] sm:$0xf]
  %v27 = vld [vmem:[%s0 + $0x10] sm:$0xf]
  %v28 = vld [vmem:[%s0 + $0x14] sm:$0xf]
  %v29 = vld [vmem:[%s0 + $0x18] sm:$0xf]
  %v30 = vld [vmem:[%s0 + $0x1c] sm:$0xf]
  %v31 = vld [vmem:[%s2] sm:$0xff]
  %v32 = vld [vmem:[%s2 + $0x8] sm:$0xff]
  %v33 = vld [vmem:[%s2 + $0x10] sm:$0xff]
  %v34 = vld [vmem:[%s2 + $0x18] sm:$0xff]
  %v35 = vld [vmem:[%s2 + $0x20] sm:$0xff]
  %v36 = vld [vmem:[%s2 + $0x28] sm:$0xff]
  %v37 = vld [vmem:[%s2 + $0x30] sm:$0xff]
  %v38 = vld [vmem:[%s2 + $0x38] sm:$0xff]
  %40 = vset.pattern.permute.xlu0 0
  %41 = vperm.xlu0 %40, %v31
  %v42 = vpop.permute.xlu0 %41
  %45 = vset.pattern.permute.xlu0 0
  %46 = vperm.xlu0 %45, %v32
  %v47 = vpop.permute.xlu0 %46
  %50 = vset.pattern.permute.xlu0 0
  %51 = vperm.xlu0 %50, %v33
  %v52 = vpop.permute.xlu0 %51
  %55 = vset.pattern.permute.xlu0 0
  %56 = vperm.xlu0 %55, %v34
  %v57 = vpop.permute.xlu0 %56
  %60 = vset.pattern.permute.xlu0 0
  %61 = vperm.xlu0 %60, %v35
  %v62 = vpop.permute.xlu0 %61
  %65 = vset.pattern.permute.xlu0 0
  %66 = vperm.xlu0 %65, %v36
  %v67 = vpop.permute.xlu0 %66
  %70 = vset.pattern.permute.xlu0 0
  %71 = vperm.xlu0 %70, %v37
  %v72 = vpop.permute.xlu0 %71
  %75 = vset.pattern.permute.xlu0 0
  %76 = vperm.xlu0 %75, %v38
  %v77 = vpop.permute.xlu0 %76
  %v87 = vunpack.c.l.b16 %v15
  %v88 = vunpack.c.l.b16 %v16
  %v89 = vunpack.c.l.b16 %v17
  %v90 = vunpack.c.l.b16 %v18
  %v91 = vunpack.c.l.b16 %v19
  %v92 = vunpack.c.l.b16 %v20
  %v93 = vunpack.c.l.b16 %v21
  %v94 = vunpack.c.l.b16 %v22
  %v95 = vpack.c.b16 %v88, %v87
  %v96 = vpack.c.b16 %v90, %v89
  %v97 = vpack.c.b16 %v92, %v91
  %v98 = vpack.c.b16 %v94, %v93
  %v107 = vunpack.c.l.b16 %v23
  %v108 = vunpack.c.l.b16 %v24
  %v109 = vunpack.c.l.b16 %v25
  %v110 = vunpack.c.l.b16 %v26
  %v111 = vunpack.c.l.b16 %v27
  %v112 = vunpack.c.l.b16 %v28
  %v113 = vunpack.c.l.b16 %v29
  %v114 = vunpack.c.l.b16 %v30
  %v115 = vpack.c.b16 %v108, %v107
  %v116 = vpack.c.b16 %v110, %v109
  %v117 = vpack.c.b16 %v112, %v111
  %v118 = vpack.c.b16 %v114, %v113
  %vm123 = vcmask 523264
  %v125 = vsel %vm123, %v95, 0
  %v128 = vsel %vm123, %v96, 0
  %v131 = vsel %vm123, %v97, 0
  %v134 = vsel %vm123, %v98, 0
  %136 = vmatprep.subr.bf16.mxu0 0
  %137 = vmatpush1.bf16.msra.mxu0 %v115
  %138 = vmatprep.subr.bf16.mxu0 0
  %139 = vmatpush1.bf16.msra.mxu0 %v116
  %140 = vmatprep.subr.bf16.mxu0 0
  %141 = vmatpush1.bf16.msra.mxu0 %v117
  %142 = vmatprep.subr.bf16.mxu0 0
  %143 = vmatpush1.bf16.msra.mxu0 %v118
  %144 = vmatprep.subr.bf16.mxu0 0
  %145 = vmatpush1.bf16.msra.mxu0 0
  %146 = vmatprep.subr.bf16.mxu0 0
  %147 = vmatpush1.bf16.msra.mxu0 0
  %148 = vmatprep.subr.bf16.mxu0 0
  %149 = vmatpush1.bf16.msra.mxu0 0
  %150 = vmatprep.subr.bf16.mxu0 0
  %151 = vmatpush1.bf16.msra.mxu0 0
  %152 = vmatprep.subr.bf16.mxu0 0
  %153 = vmatpush1.bf16.msra.mxu0 0
  %154 = vmatprep.subr.bf16.mxu0 0
  %155 = vmatpush1.bf16.msra.mxu0 0
  %156 = vmatprep.subr.bf16.mxu0 0
  %157 = vmatpush1.bf16.msra.mxu0 0
  %158 = vmatprep.subr.bf16.mxu0 0
  %159 = vmatpush1.bf16.msra.mxu0 0
  %160 = vmatprep.subr.bf16.mxu0 0
  %161 = vmatpush1.bf16.msra.mxu0 0
  %162 = vmatprep.subr.bf16.mxu0 0
  %163 = vmatpush1.bf16.msra.mxu0 0
  %164 = vmatprep.subr.bf16.mxu0 0
  %165 = vmatpush1.bf16.msra.mxu0 0
  %166 = vmatprep.subr.bf16.mxu0 0
  %167 = vmatpush1.bf16.msra.mxu0 0
  %168 = vmatprep.mubr.bf16.mxu0 0
  %169 = vmatmul.mubr.bf16.gmra.mrb[0].mxu0 %v125
  %v170 = vpop.f32.mrb[0].mxu0
  %v171 = vadd.f32 %v42, %v170
  %v172 = vpop.f32.mrb[0].mxu0
  %v173 = vpop.f32.mrb[0].mxu0
  %v174 = vadd.f32 %v47, %v173
  %v175 = vpop.f32.mrb[0].mxu0
  %176 = vmatprep.mubr.bf16.mxu0 0
  %177 = vmatmul.mubr.bf16.gmra.mrb[0].mxu0 %v128
  %v178 = vpop.f32.mrb[0].mxu0
  %v179 = vadd.f32 %v52, %v178
  %v180 = vpop.f32.mrb[0].mxu0
  %v181 = vpop.f32.mrb[0].mxu0
  %v182 = vadd.f32 %v57, %v181
  %v183 = vpop.f32.mrb[0].mxu0
  %184 = vmatprep.mubr.bf16.mxu0 0
  %185 = vmatmul.mubr.bf16.gmra.mrb[0].mxu0 %v131
  %v186 = vpop.f32.mrb[0].mxu0
  %v187 = vadd.f32 %v62, %v186
  %v188 = vpop.f32.mrb[0].mxu0
  %v189 = vpop.f32.mrb[0].mxu0
  %v190 = vadd.f32 %v67, %v189
  %v191 = vpop.f32.mrb[0].mxu0
  %192 = vmatprep.mubr.bf16.mxu0 0
  %193 = vmatmul.mubr.bf16.gmra.mrb[0].mxu0 %v134
  %v194 = vpop.f32.mrb[0].mxu0
  %v195 = vadd.f32 %v72, %v194
  %v196 = vpop.f32.mrb[0].mxu0
  %v197 = vpop.f32.mrb[0].mxu0
  %v198 = vadd.f32 %v77, %v197
  %v199 = vpop.f32.mrb[0].mxu0
  %200 = vdwg.mxu0
  %v201 = vmax.f32 %v171, 0.0
  %v202 = vmax.f32 %v174, 0.0
  %v203 = vmax.f32 %v179, 0.0
  %v204 = vmax.f32 %v182, 0.0
  %v205 = vmax.f32 %v187, 0.0
  %v206 = vmax.f32 %v190, 0.0
  %v207 = vmax.f32 %v195, 0.0
  %v208 = vmax.f32 %v198, 0.0
  %v209 = vpack.c.bf16 %v202, %v201
  %v210 = vpack.c.bf16 %v204, %v203
  %v211 = vpack.c.bf16 %v206, %v205
  %v212 = vpack.c.bf16 %v208, %v207
  %v217 = vunpack.c.l.b16 %v209
  %v218 = vunpack.c.h.b16 %v209
  %v219 = vunpack.c.l.b16 %v210
  %v220 = vunpack.c.h.b16 %v210
  %v221 = vunpack.c.l.b16 %v211
  %v222 = vunpack.c.h.b16 %v211
  %v223 = vunpack.c.l.b16 %v212
  %v224 = vunpack.c.h.b16 %v212
  %v225 = vpack.c.b16 %v217, %v217
  %v226 = vpack.c.b16 %v218, %v218
  %v227 = vpack.c.b16 %v219, %v219
  %v228 = vpack.c.b16 %v220, %v220
  %v229 = vpack.c.b16 %v221, %v221
  %v230 = vpack.c.b16 %v222, %v222
  %v231 = vpack.c.b16 %v223, %v223
  %v232 = vpack.c.b16 %v224, %v224
  %241 = vst [vmem:[%s3] sm:$0xf] %v225
  %242 = vst [vmem:[%s3 + $0x4] sm:$0xf] %v226
  %243 = vst [vmem:[%s3 + $0x8] sm:$0xf] %v227
  %244 = vst [vmem:[%s3 + $0xc] sm:$0xf] %v228
  %245 = vst [vmem:[%s3 + $0x10] sm:$0xf] %v229
  %246 = vst [vmem:[%s3 + $0x14] sm:$0xf] %v230
  %247 = vst [vmem:[%s3 + $0x18] sm:$0xf] %v231
  %248 = vst [vmem:[%s3 + $0x1c] sm:$0xf] %v232
  // Predicated region
  $region14: #{temporal_block2d_forward.1} parent=0 // pred_check
    _
  $region15: #{temporal_block2d_forward.1} parent=0 // pred_check_branch
    %250 = sbr.rel (0) target = $region17
  $region16: #{temporal_block2d_forward.1} parent=0 // pred_region
    _
  $region17: #{temporal_block2d_forward.1} parent=0 // pred_fallthru
    _
  // Predicated region
  $region18: #{temporal_block2d_forward.1} parent=0 // pred_check
    _
  $region19: #{temporal_block2d_forward.1} parent=0 // pred_check_branch
    %252 = sbr.rel (0) target = $region21
  $region20: #{temporal_block2d_forward.1} parent=0 // pred_region
    _
  $region21: #{temporal_block2d_forward.1} parent=0 // pred_fallthru
    _

</llo_original>
